<compile_context>
chip_gen: v7x
topology: tpu7x:2x2x1
jax: 0.10.0
libtpu: 0.0.40
codegen_flags: <defaults>
</compile_context>

<pallas_src>
import jax
import jax.numpy as jnp
from jax.experimental import pallas as pl
from jax.experimental.pallas import tpu as pltpu


_TARGET_BLOCK_BYTES = 8 * 1024 * 1024     # per logical block (per buffer)
_VMEM_LIMIT_BYTES = 48 * 1024 * 1024      # 2 bufs in + 2 bufs out + headroom


def _copy_kernel(x_ref, o_ref):
    # Pure elementwise copy of the current lane-dense block.
    o_ref[...] = x_ref[...]


def _pick_lane(total: int, sub: int):
    """Largest lane width (multiple of 128) dividing `total`.

    Prefers a lane whose row count is a multiple of the dtype-aware sublane
    granularity `sub`, so blocks land on full packed (sub, 128) tiles.
    """
    best_any = None
    for cand in (2048, 1024, 512, 256, 128):
        if total % cand:
            continue
        if best_any is None:
            best_any = cand
        rows = total // cand
        if rows >= sub and rows % sub == 0:
            return cand
    return best_any  # may be None if total is not a multiple of 128


def programmer_forward(x: jax.Array, *, donate: bool = False,
                       materialize: bool = True) -> jax.Array:
    """Pallas equivalent of Programmer.forward(x) == x.

    materialize=False returns `x` directly (zero HBM traffic; preferred inside
    a larger jitted graph). materialize=True runs a bandwidth-optimized Pallas
    copy into a fresh buffer. donate=True additionally aliases the output onto
    the input — only use when the caller actually donates `x`, otherwise XLA
    inserts a defensive pre-copy.
    """
    if not materialize:
        return x

    orig_shape = x.shape
    total = x.size
    if total == 0:
        return x

    itemsize = jnp.dtype(x.dtype).itemsize
    # Packed sublane granularity: 8 rows (f32), 16 (bf16/f16), 32 (int8/fp8).
    sub = 8 * max(1, 4 // max(itemsize, 1))

    alias = {0: 0} if donate else {}
    cparams = pltpu.CompilerParams(
        dimension_semantics=("parallel",),
        vmem_limit_bytes=_VMEM_LIMIT_BYTES,
    )

    lane = _pick_lane(total, sub)

    if lane is None:
        # Element count not a multiple of 128: flatten to (1, total) and tile
        # the lane axis with a bounded block (partial last block is masked by
        # Pallas).  Bounded VMEM regardless of input size — no whole-array
        # staging.  The single sublane row is padded to 8 in VMEM, so size the
        # block accounting for that 8x padding.
        flat = x.reshape(1, total)
        tile_cols = max(128,
                        (_TARGET_BLOCK_BYTES // (8 * itemsize)) // 128 * 128)
        tile_cols = min(tile_cols, pl.cdiv(total, 128) * 128)
        grid = (pl.cdiv(total, tile_cols),)
        block = (1, tile_cols)
        in_spec = pl.BlockSpec(block, lambda i: (0, i))
        out_spec = pl.BlockSpec(block, lambda i: (0, i))
    else:
        rows = total // lane
        flat = x.reshape(rows, lane)
        row_bytes = lane * itemsize
        # ~8 MiB of rows per block, rounded down to the sublane granularity.
        target_rows = max(sub, (_TARGET_BLOCK_BYTES // row_bytes) // sub * sub)
        if rows < sub:
            tile_rows = rows                      # full extent -> always legal
        elif rows % sub == 0:
            tile_rows = min(target_rows, rows)    # both multiples of `sub`
        else:
            # Multiple-of-sub tile; Pallas masks the partial last block.
            tile_rows = min(target_rows, (rows // sub) * sub)
        grid = (pl.cdiv(rows, tile_rows),)
        block = (tile_rows, lane)
        in_spec = pl.BlockSpec(block, lambda i: (i, 0))
        out_spec = pl.BlockSpec(block, lambda i: (i, 0))

    out = pl.pallas_call(
        _copy_kernel,
        out_shape=jax.ShapeDtypeStruct(flat.shape, flat.dtype),
        grid=grid,
        in_specs=[in_spec],
        out_specs=out_spec,
        input_output_aliases=alias,
        compiler_params=cparams,
    )(flat)
    return out.reshape(orig_shape)


if __name__ == "__main__":
    key = jax.random.PRNGKey(0)
    x = jax.random.normal(key, (2, 4, 16, 16), dtype=jnp.float32)
    expected = jnp.array(x)  # independent copy for the correctness check

    y = programmer_forward(x)          # non-donated path (no aliasing)
    jax.block_until_ready(y)

    assert y.shape == expected.shape and y.dtype == expected.dtype
    assert bool(jnp.array_equal(y, expected))
    print("KERNEL_OK")
</pallas_src>

<mosaic_0001>
module attributes {stable_mosaic.version = 11 : i64} {
  func.func @_copy_kernel(%arg0: i32, %arg1: memref<8x256xf32, #tpu.memory_space<vmem>>, %arg2: memref<8x256xf32, #tpu.memory_space<vmem>>) attributes {dimension_semantics = [#tpu.dimension_semantics<parallel>], iteration_bounds = array<i64: 1>, scalar_prefetch = 0 : i64, scratch_operands = 0 : i64, tpu.core_type = #tpu.core_type<tc>, window_params = [{transform_indices = @transform_0, window_bounds = array<i64: 8, 256>}, {transform_indices = @transform_1, window_bounds = array<i64: 8, 256>}]} {
    %c0 = arith.constant 0 : index
    %c0_0 = arith.constant 0 : index
    %0 = vector.load %arg1[%c0, %c0_0] : memref<8x256xf32, #tpu.memory_space<vmem>>, vector<8x256xf32>
    %c0_1 = arith.constant 0 : index
    %c0_2 = arith.constant 0 : index
    %1 = vector.load %arg2[%c0_1, %c0_2] : memref<8x256xf32, #tpu.memory_space<vmem>>, vector<8x256xf32>
    tpu.vector_store %arg2[%c0_1, %c0_2], %0 {strides = array<i32>} : memref<8x256xf32, #tpu.memory_space<vmem>>, vector<8x256xf32>,
    return
  }
  func.func @transform_0(%arg0: i32) -> (i32, i32) {
    %c0_i32 = arith.constant 0 : i32
    %c0_i32_0 = arith.constant 0 : i32
    return %arg0, %c0_i32 : i32, i32
  }
  func.func @transform_1(%arg0: i32) -> (i32, i32) {
    %c0_i32 = arith.constant 0 : i32
    %c0_i32_0 = arith.constant 0 : i32
    return %arg0, %c0_i32 : i32, i32
  }
}

</mosaic_0001>

<llo_original>
// kernel: tpu_custom_call.1
$region0: #{tpu_custom_call.1}
  #allocation0 [shape = 'u32[]', space=smem, size = 0x4, offset = 0x4, fixed_abs, tag = 'smem constant byte address 0x4 - core index']
  #allocation1 [shape = 'u32[144,128]{1,0:T(1,128)}', space=vmem, size = 0x12000, scoped, tag = 'internal scratch']
  %s0 = inlined_call_operand.hbm [shape: f32[8,256], index: 0, kind: input, shape index: {}]
  %s1 = inlined_call_operand.hbm [shape: f32[8,256], index: 1, kind: output, shape index: {}]
  %s2 = sld [smem:[#allocation0]]
  $region18: #{tpu_custom_call.1} parent=0
    _
  %s4 = ssub.s32 1, %s2
  %s5 = scalar_select 0, %s4, %s2
  $region1: #{tpu_custom_call.1} parent=0
    #allocation2 [shape = 'u8[8192]{0}', space=vmem, size = 0x2000, scoped, tag = 'input window, operand 0, single buffered']
    #allocation3 [shape = 's32[1]{0}', space=sflag, size = 0x4, scoped, tag = 'scoped memory for tpu_custom_call.1']
    #allocation4 [shape = 's32[1]{0}', space=sflag, size = 0x4, scoped, tag = 'scoped memory for tpu_custom_call.1']
    #allocation5 [shape = 'u8[8192]{0}', space=vmem, size = 0x2000, scoped, tag = 'output window, operand 0, single buffered']
    %6 = vsyncpa [#allocation3], 0
    %7 = vsyncpa [#allocation4], 0
    // Predicated region
    $region2: #{tpu_custom_call.1} parent=1 // pred_check
      _
    $region3: #{tpu_custom_call.1} parent=1 // pred_check_branch
      %9 = sbr.rel (0) target = $region5
    $region4: #{tpu_custom_call.1} parent=1 // pred_region
      %s11 = ssub.s32 256, 256
      %12 = vsyncadd [#allocation3], %s11
      %s14 = sshll.u32 [#allocation2], 4
      %s15 = int_to_ptr.vmem [resolvable:$true] %s14
      %17 = dma.hbm_to_vmem [thread:$0]  %s0, 256, %s15, [#allocation3]
    $region5: #{tpu_custom_call.1} parent=1 // pred_fallthru
      _
    // Predicated region
    $region6: #{tpu_custom_call.1} parent=1 // pred_check
      _
    $region7: #{tpu_custom_call.1} parent=1 // pred_check_branch
      %19 = sbr.rel (0) target = $region9
    $region8: #{tpu_custom_call.1} parent=1 // pred_region
      %20 = dma.done [#allocation3], 256
    $region9: #{tpu_custom_call.1} parent=1 // pred_fallthru
      _
    %v21 = vld [vmem:[#allocation2] sm:$0xff]
    %v22 = vld [vmem:[#allocation2 + $0x8] sm:$0xff]
    %23 = vst [vmem:[#allocation5] sm:$0xff] %v21
    %24 = vst [vmem:[#allocation5 + $0x8] sm:$0xff] %v22
    // Predicated region
    $region10: #{tpu_custom_call.1} parent=1 // pred_check
      _
    $region11: #{tpu_custom_call.1} parent=1 // pred_check_branch
      %26 = sbr.rel (0) target = $region13
    $region12: #{tpu_custom_call.1} parent=1 // pred_region
      %s28 = ssub.s32 256, 256
      %29 = vsyncadd [#allocation4], %s28
      %s31 = sshll.u32 [#allocation5], 4
      %s32 = int_to_ptr.vmem [resolvable:$true] %s31
      %34 = dma.vmem_to_hbm [thread:$0]  %s32, 256, %s1, [#allocation4]
    $region13: #{tpu_custom_call.1} parent=1 // pred_fallthru
      _
    // Predicated region
    $region14: #{tpu_custom_call.1} parent=1 // pred_check
      _
    $region15: #{tpu_custom_call.1} parent=1 // pred_check_branch
      %36 = sbr.rel (0) target = $region17
    $region16: #{tpu_custom_call.1} parent=1 // pred_region
      %37 = dma.done [#allocation4], 256
    $region17: #{tpu_custom_call.1} parent=1 // pred_fallthru
      _
    %38 = vsyncpa [#allocation3], 1
    %39 = vsyncpa [#allocation4], 1

</llo_original>
